<compile_context>
chip_gen: v5e
topology: v5e:2x2
jax: 0.10.0
libtpu: 0.0.40
codegen_flags: <defaults>
</compile_context>

<pallas_src>
from functools import partial

import jax
import jax.numpy as jnp
from jax import lax
from jax.experimental import pallas as pl
from jax.experimental.pallas import tpu as pltpu

_EPS = 1e-5


# --------------------------------------------------------------------------- #
# VMEM budgeting & tile selection
# --------------------------------------------------------------------------- #
def _vmem_budget_bytes():
    """Scoped-VMEM budget: 3/4 of physical VMEM, capped at 96 MiB.

    v5e/v6e (128 MiB physical) -> 96 MiB; v7x (64 MiB) -> 48 MiB; unknown -> 48 MiB.
    """
    cap = 64 * 1024 * 1024
    try:
        cap = int(pltpu.get_tpu_info().vmem_capacity_bytes)
    except Exception:
        pass
    return min(3 * cap // 4, 96 * 1024 * 1024)


def _row_tile(rows, target):
    """Sublane (row) tile: multiple of 8 (or full extent), >= 2 grid steps when possible."""
    if rows > target:
        return target
    t = (rows // 2 // 8) * 8          # split for megacore if 8-granularity allows
    return t if t >= 8 else rows      # else full extent (always legal)


def _lane_tile(lanes, target):
    """Lane tile: `target` (multiple of 128) or the full extent."""
    return lanes if lanes <= target else target


def _channel_tile(c, n, hw, f32_block_budget):
    """Channel-group size for the fused path, or None if nothing fits VMEM.

    Candidates are the full extent or multiples of 8 (block-shape rule).  Prefer
    a size that (a) fits the f32 working budget, (b) gives >= 2 grid steps
    (both v7x TensorCores busy), (c) divides C evenly (balanced steps).
    """
    if c <= 8:
        cands = [c]
    else:
        cands = ([c] if c % 8 != 0 else []) + list(range((c // 8) * 8, 0, -8))
    fitting = [tc for tc in cands if n * tc * hw * 4 <= f32_block_budget]
    if not fitting:
        return None
    multi = [tc for tc in fitting if pl.cdiv(c, tc) >= 2]
    even = [tc for tc in multi if c % tc == 0]
    if even:
        return even[0]
    if multi:
        return multi[0]
    return fitting[0]


# --------------------------------------------------------------------------- #
# Kernels
# --------------------------------------------------------------------------- #
def _fused_kernel(x_ref, g1_ref, b1_ref, o_ref, *, inv_m, eps):
    """Single-pass BN stats + gate for one (N, tc, HW) channel-group block.

    g1 = gamma * wbn, b1 = beta * wbn (per channel, shape (1, tc, 1)).
    out = sigmoid((x - mean) * inv_std * g1 + b1) * x
    """
    x = x_ref[...].astype(jnp.float32)                       # (N, tc, HW) in vregs
    s = jnp.sum(x, axis=2, keepdims=True)                    # lane reduce  (N, tc, 1)
    mean = jnp.sum(s, axis=0, keepdims=True) * inv_m         # (1, tc, 1)
    xc = x - mean
    s2 = jnp.sum(xc * xc, axis=2, keepdims=True)             # centered -> no cancellation
    var = jnp.sum(s2, axis=0, keepdims=True) * inv_m         # (1, tc, 1), >= 0
    a = lax.rsqrt(var + eps) * g1_ref[...]                   # (1, tc, 1)
    z = xc * a + b1_ref[...]
    gate = 1.0 / (1.0 + jnp.exp(-z))                         # exp on EUP; hidden by HBM
    o_ref[...] = (gate * x).astype(o_ref.dtype)              # write in caller's dtype


def _row_stats_kernel(x_ref, s_ref, ssq_ref, *, lanes_total, tl, need_mask):
    """Per-row sum / sum-of-squares accumulated across the lane-tile grid axis.

    x_ref:   (TR, TL) tile of the flat (N*C, H*W) slab (caller dtype)
    s_ref:   (TR, 1)  f32 resident accumulator
    ssq_ref: (TR, 1)  f32 resident accumulator
    """
    @pl.when(pl.program_id(1) == 0)
    def _():
        s_ref[...] = jnp.zeros_like(s_ref)
        ssq_ref[...] = jnp.zeros_like(ssq_ref)

    x = x_ref[...].astype(jnp.float32)
    if need_mask:  # static: only emitted when H*W is not a multiple of the lane tile
        lane0 = pl.program_id(1) * tl
        lane_idx = lax.broadcasted_iota(jnp.int32, x.shape, 1) + lane0
        x = jnp.where(lane_idx < lanes_total, x, 0.0)
    s_ref[...] += jnp.sum(x, axis=1, keepdims=True)          # lane reduce (XLU slot)
    ssq_ref[...] += jnp.sum(x * x, axis=1, keepdims=True)


def _apply_kernel(x_ref, a_ref, b_ref, o_ref):
    """out = sigmoid(x * a + b) * x with per-row folded BN + channel weight."""
    x = x_ref[...].astype(jnp.float32)        # (TR, TL)
    z = x * a_ref[...] + b_ref[...]           # (TR, 1) broadcast along lanes
    gate = 1.0 / (1.0 + jnp.exp(-z))
    o_ref[...] = (gate * x).astype(o_ref.dtype)


# --------------------------------------------------------------------------- #
# Wrapper
# --------------------------------------------------------------------------- #
def channel_att(x_nchw, gamma, beta, eps=_EPS, force_two_pass=False):
    """Forward of Att / Channel_Att.  x: (N,C,H,W); gamma, beta: (C,)."""
    n, c, h, w = x_nchw.shape
    hw = h * w
    rows = n * c
    m = n * hw                                   # BN reduction size per channel
    out_dtype = x_nchw.dtype

    # Tiny per-channel folding, done once in plain JAX (f32).
    gamma32 = gamma.astype(jnp.float32)
    beta32 = beta.astype(jnp.float32)
    wbn = jnp.abs(gamma32) / jnp.sum(jnp.abs(gamma32))
    g1 = gamma32 * wbn                           # (C,)
    b1 = beta32 * wbn                            # (C,)

    vmem_limit = _vmem_budget_bytes()

    # ---- Fused single-pass path: 1 read + 1 write of x ----------------------
    if not force_two_pass:
        tc = _channel_tile(c, n, hw, f32_block_budget=vmem_limit // 12)
        if tc is not None:
            x3 = x_nchw.reshape(n, c, hw)                      # free reshape
            out3 = pl.pallas_call(
                partial(_fused_kernel, inv_m=1.0 / float(m), eps=float(eps)),
                out_shape=jax.ShapeDtypeStruct((n, c, hw), out_dtype),
                grid=(pl.cdiv(c, tc),),
                in_specs=[
                    pl.BlockSpec((n, tc, hw), lambda j: (0, j, 0)),
                    pl.BlockSpec((1, tc, 1), lambda j: (0, j, 0)),
                    pl.BlockSpec((1, tc, 1), lambda j: (0, j, 0)),
                ],
                out_specs=pl.BlockSpec((n, tc, hw), lambda j: (0, j, 0)),
                compiler_params=pltpu.CompilerParams(
                    dimension_semantics=("parallel",),
                    vmem_limit_bytes=vmem_limit,
                ),
            )(x3, g1.reshape(1, c, 1), b1.reshape(1, c, 1))
            return out3.reshape(n, c, h, w)

    # ---- Two-pass fallback (x stays in caller dtype on the HBM wire) --------
    x2d = x_nchw.reshape(rows, hw)                              # free reshape

    # Pass 1: tiled per-row partial sums (reduction axis last / "arbitrary").
    tr1 = _row_tile(rows, 512)
    tl1 = _lane_tile(hw, 4096)
    need_mask = (hw % tl1) != 0
    row_sum, row_sumsq = pl.pallas_call(
        partial(_row_stats_kernel, lanes_total=hw, tl=tl1, need_mask=need_mask),
        out_shape=(
            jax.ShapeDtypeStruct((rows, 1), jnp.float32),
            jax.ShapeDtypeStruct((rows, 1), jnp.float32),
        ),
        grid=(pl.cdiv(rows, tr1), pl.cdiv(hw, tl1)),
        in_specs=[pl.BlockSpec((tr1, tl1), lambda r, t: (r, t))],
        out_specs=(
            pl.BlockSpec((tr1, 1), lambda r, t: (r, 0)),
            pl.BlockSpec((tr1, 1), lambda r, t: (r, 0)),
        ),
        compiler_params=pltpu.CompilerParams(
            dimension_semantics=("parallel", "arbitrary"),
            vmem_limit_bytes=vmem_limit,
        ),
    )(x2d)

    # Fold BN + channel weighting into per-row (a, b) vectors (tiny, once).
    sum_c = jnp.sum(row_sum.reshape(n, c), axis=0)              # (C,)
    sumsq_c = jnp.sum(row_sumsq.reshape(n, c), axis=0)          # (C,)
    mean_c = sum_c / m
    var_c = jnp.maximum(sumsq_c / m - mean_c * mean_c, 0.0)     # clamp: no NaN from rsqrt
    a_c = lax.rsqrt(var_c + eps) * g1                           # (C,)
    b_c = b1 - mean_c * a_c                                     # (C,)
    a_rows = jnp.broadcast_to(a_c[None, :], (n, c)).reshape(rows, 1)
    b_rows = jnp.broadcast_to(b_c[None, :], (n, c)).reshape(rows, 1)

    # Pass 2: tiled elementwise gate (both axes parallel / megacore).
    tr2 = _row_tile(rows, 512)
    tl2 = _lane_tile(hw, 2048)
    out2d = pl.pallas_call(
        _apply_kernel,
        out_shape=jax.ShapeDtypeStruct((rows, hw), out_dtype),
        grid=(pl.cdiv(rows, tr2), pl.cdiv(hw, tl2)),
        in_specs=[
            pl.BlockSpec((tr2, tl2), lambda r, t: (r, t)),
            pl.BlockSpec((tr2, 1), lambda r, t: (r, 0)),
            pl.BlockSpec((tr2, 1), lambda r, t: (r, 0)),
        ],
        out_specs=pl.BlockSpec((tr2, tl2), lambda r, t: (r, t)),
        compiler_params=pltpu.CompilerParams(
            dimension_semantics=("parallel", "parallel"),
            vmem_limit_bytes=vmem_limit,
        ),
    )(x2d, a_rows, b_rows)

    return out2d.reshape(n, c, h, w)


# --------------------------------------------------------------------------- #
# Reference & self-test
# --------------------------------------------------------------------------- #
def _reference(x_nchw, gamma, beta):
    """Pure-JAX reference mirroring the PyTorch forward (training-mode BN)."""
    x = x_nchw.astype(jnp.float32)
    mean = jnp.mean(x, axis=(0, 2, 3), keepdims=True)
    var = jnp.mean((x - mean) ** 2, axis=(0, 2, 3), keepdims=True)
    g = gamma.reshape(1, -1, 1, 1)
    b = beta.reshape(1, -1, 1, 1)
    xn = (x - mean) * lax.rsqrt(var + _EPS) * g + b
    wbn = jnp.abs(gamma) / jnp.sum(jnp.abs(gamma))
    return jax.nn.sigmoid(xn * wbn.reshape(1, -1, 1, 1)) * x


if __name__ == "__main__":
    key = jax.random.PRNGKey(0)
    kx, kg, kb = jax.random.split(key, 3)

    N, C, H, W = 2, 4, 16, 16
    x = jax.random.normal(kx, (N, C, H, W), dtype=jnp.float32)
    # PyTorch default init is gamma=1, beta=0; random values exercise the full path.
    gamma = jax.random.normal(kg, (C,), dtype=jnp.float32) * 0.5 + 1.0
    beta = jax.random.normal(kb, (C,), dtype=jnp.float32) * 0.1
    ref = _reference(x, gamma, beta)

    # 1) fused single-pass path (default dispatch for this size).
    fused_fn = jax.jit(channel_att)
    out = jax.block_until_ready(fused_fn(x, gamma, beta))
    assert out.shape == (N, C, H, W) and out.dtype == x.dtype
    assert jnp.allclose(out, ref, atol=1e-4, rtol=1e-4)

    # 2) bf16 on the HBM wire (fused path), f32 accumulation inside the kernel.
    xb = x.astype(jnp.bfloat16)
    refb = _reference(xb.astype(jnp.float32), gamma, beta)
    outb = jax.block_until_ready(fused_fn(xb, gamma, beta))
    assert outb.dtype == jnp.bfloat16
    assert jnp.allclose(outb.astype(jnp.float32), refb, atol=2e-2, rtol=2e-2)

    # 3) two-pass fallback with a non-divisible H*W (exercises cdiv grid + lane mask).
    x2 = jax.random.normal(kx, (1, 2, 65, 65), dtype=jnp.float32)
    g2 = jax.random.normal(kg, (2,), dtype=jnp.float32) * 0.5 + 1.0
    b2 = jax.random.normal(kb, (2,), dtype=jnp.float32) * 0.1
    two_pass_fn = jax.jit(partial(channel_att, force_two_pass=True))
    out2 = jax.block_until_ready(two_pass_fn(x2, g2, b2))
    assert jnp.allclose(out2, _reference(x2, g2, b2), atol=1e-4, rtol=1e-4)

    print("KERNEL_OK")
</pallas_src>

<mosaic_0001>
module attributes {stable_mosaic.version = 11 : i64} {
  func.func @_fused_kernel(%arg0: i32, %arg1: memref<2x4x256xf32, #tpu.memory_space<vmem>>, %arg2: memref<1x4x1xf32, #tpu.memory_space<vmem>>, %arg3: memref<1x4x1xf32, #tpu.memory_space<vmem>>, %arg4: memref<2x4x256xf32, #tpu.memory_space<vmem>>) attributes {dimension_semantics = [#tpu.dimension_semantics<parallel>], iteration_bounds = array<i64: 1>, scalar_prefetch = 0 : i64, scratch_operands = 0 : i64, tpu.core_type = #tpu.core_type<tc>, window_params = [{transform_indices = @transform_0, window_bounds = array<i64: 2, 4, 256>}, {transform_indices = @transform_1, window_bounds = array<i64: 1, 4, 1>}, {transform_indices = @transform_2, window_bounds = array<i64: 1, 4, 1>}, {transform_indices = @transform_3, window_bounds = array<i64: 2, 4, 256>}]} {
    %c0 = arith.constant 0 : index
    %c0_0 = arith.constant 0 : index
    %c0_1 = arith.constant 0 : index
    %0 = vector.load %arg1[%c0, %c0_0, %c0_1] : memref<2x4x256xf32, #tpu.memory_space<vmem>>, vector<2x4x256xf32>
    %cst = arith.constant dense<0.000000e+00> : vector<2x4xf32>
    %1 = vector.multi_reduction <add>, %0, %cst [2] : vector<2x4x256xf32> to vector<2x4xf32>
    %2 = vector.shape_cast %1 : vector<2x4xf32> to vector<2x4x1xf32>
    %cst_2 = arith.constant dense<0.000000e+00> : vector<4x1xf32>
    %3 = vector.multi_reduction <add>, %2, %cst_2 [0] : vector<2x4x1xf32> to vector<4x1xf32>
    %4 = vector.shape_cast %3 : vector<4x1xf32> to vector<1x4x1xf32>
    %cst_3 = arith.constant 0.001953125 : f32
    %5 = vector.broadcast %cst_3 : f32 to vector<1x4x1xf32>
    %6 = arith.mulf %4, %5 : vector<1x4x1xf32>
    %7 = vector.broadcast %6 : vector<1x4x1xf32> to vector<2x4x256xf32>
    %8 = arith.subf %0, %7 : vector<2x4x256xf32>
    %9 = arith.mulf %8, %8 : vector<2x4x256xf32>
    %cst_4 = arith.constant dense<0.000000e+00> : vector<2x4xf32>
    %10 = vector.multi_reduction <add>, %9, %cst_4 [2] : vector<2x4x256xf32> to vector<2x4xf32>
    %11 = vector.shape_cast %10 : vector<2x4xf32> to vector<2x4x1xf32>
    %cst_5 = arith.constant dense<0.000000e+00> : vector<4x1xf32>
    %12 = vector.multi_reduction <add>, %11, %cst_5 [0] : vector<2x4x1xf32> to vector<4x1xf32>
    %13 = vector.shape_cast %12 : vector<4x1xf32> to vector<1x4x1xf32>
    %cst_6 = arith.constant 0.001953125 : f32
    %14 = vector.broadcast %cst_6 : f32 to vector<1x4x1xf32>
    %15 = arith.mulf %13, %14 : vector<1x4x1xf32>
    %cst_7 = arith.constant 9.99999974E-6 : f32
    %16 = vector.broadcast %cst_7 : f32 to vector<1x4x1xf32>
    %17 = arith.addf %15, %16 : vector<1x4x1xf32>
    %18 = math.rsqrt %17 : vector<1x4x1xf32>
    %c0_8 = arith.constant 0 : index
    %c0_9 = arith.constant 0 : index
    %c0_10 = arith.constant 0 : index
    %19 = vector.load %arg2[%c0_8, %c0_9, %c0_10] : memref<1x4x1xf32, #tpu.memory_space<vmem>>, vector<1x4x1xf32>
    %20 = arith.mulf %18, %19 : vector<1x4x1xf32>
    %21 = vector.broadcast %20 : vector<1x4x1xf32> to vector<2x4x256xf32>
    %22 = arith.mulf %8, %21 : vector<2x4x256xf32>
    %c0_11 = arith.constant 0 : index
    %c0_12 = arith.constant 0 : index
    %c0_13 = arith.constant 0 : index
    %23 = vector.load %arg3[%c0_11, %c0_12, %c0_13] : memref<1x4x1xf32, #tpu.memory_space<vmem>>, vector<1x4x1xf32>
    %24 = vector.broadcast %23 : vector<1x4x1xf32> to vector<2x4x256xf32>
    %25 = arith.addf %22, %24 : vector<2x4x256xf32>
    %cst_14 = arith.constant 0.000000e+00 : f32
    %26 = vector.broadcast %cst_14 : f32 to vector<2x4x256xf32>
    %27 = arith.subf %26, %25 : vector<2x4x256xf32>
    %28 = math.exp %27 : vector<2x4x256xf32>
    %cst_15 = arith.constant 1.000000e+00 : f32
    %29 = vector.broadcast %cst_15 : f32 to vector<2x4x256xf32>
    %30 = arith.addf %29, %28 : vector<2x4x256xf32>
    %cst_16 = arith.constant 1.000000e+00 : f32
    %31 = vector.broadcast %cst_16 : f32 to vector<2x4x256xf32>
    %32 = arith.divf %31, %30 : vector<2x4x256xf32>
    %33 = arith.mulf %32, %0 : vector<2x4x256xf32>
    %c0_17 = arith.constant 0 : index
    %c0_18 = arith.constant 0 : index
    %c0_19 = arith.constant 0 : index
    %34 = vector.load %arg4[%c0_17, %c0_18, %c0_19] : memref<2x4x256xf32, #tpu.memory_space<vmem>>, vector<2x4x256xf32>
    tpu.vector_store %arg4[%c0_17, %c0_18, %c0_19], %33 {strides = array<i32>} : memref<2x4x256xf32, #tpu.memory_space<vmem>>, vector<2x4x256xf32>,
    return
  }
  func.func @transform_0(%arg0: i32) -> (i32, i32, i32) {
    %c0_i32 = arith.constant 0 : i32
    %c0_i32_0 = arith.constant 0 : i32
    %c0_i32_1 = arith.constant 0 : i32
    return %c0_i32, %arg0, %c0_i32_0 : i32, i32, i32
  }
  func.func @transform_1(%arg0: i32) -> (i32, i32, i32) {
    %c0_i32 = arith.constant 0 : i32
    %c0_i32_0 = arith.constant 0 : i32
    %c0_i32_1 = arith.constant 0 : i32
    return %c0_i32, %arg0, %c0_i32_0 : i32, i32, i32
  }
  func.func @transform_2(%arg0: i32) -> (i32, i32, i32) {
    %c0_i32 = arith.constant 0 : i32
    %c0_i32_0 = arith.constant 0 : i32
    %c0_i32_1 = arith.constant 0 : i32
    return %c0_i32, %arg0, %c0_i32_0 : i32, i32, i32
  }
  func.func @transform_3(%arg0: i32) -> (i32, i32, i32) {
    %c0_i32 = arith.constant 0 : i32
    %c0_i32_0 = arith.constant 0 : i32
    %c0_i32_1 = arith.constant 0 : i32
    return %c0_i32, %arg0, %c0_i32_0 : i32, i32, i32
  }
}

</mosaic_0001>

<llo_original>
// kernel: channel_att.1
$region0: #{channel_att.1}
  #allocation0 [shape = 'u32[]', space=smem, size = 0x4, offset = 0x4, fixed_abs, tag = 'smem constant byte address 0x4 - core index']
  #allocation1 [shape = 'u32[72,128]{1,0:T(1,128)}', space=vmem, size = 0x9000, scoped, tag = 'internal scratch']
  %s0 = inlined_call_operand.vmem [shape: f32[2,4,256], index: 0, kind: input, shape index: {}]
  %s1 = inlined_call_operand.vmem [shape: f32[1,4,1], index: 1, kind: input, shape index: {}]
  %s2 = inlined_call_operand.vmem [shape: f32[1,4,1], index: 2, kind: input, shape index: {}]
  %s3 = inlined_call_operand.vmem [shape: f32[2,4,256], index: 3, kind: output, shape index: {}]
  %s4 = sld [smem:[#allocation0]]
  $region22: #{channel_att.1} parent=0
    _
  %s6 = ssub.s32 1, %s4
  %s7 = scalar_select 0, %s6, %s4
  // Predicated region
  $region2: #{channel_att.1} parent=0 // pred_check
    _
  $region3: #{channel_att.1} parent=0 // pred_check_branch
    %9 = sbr.rel (0) target = $region5
  $region4: #{channel_att.1} parent=0 // pred_region
    _
  $region5: #{channel_att.1} parent=0 // pred_fallthru
    _
  // Predicated region
  $region6: #{channel_att.1} parent=0 // pred_check
    _
  $region7: #{channel_att.1} parent=0 // pred_check_branch
    %11 = sbr.rel (0) target = $region9
  $region8: #{channel_att.1} parent=0 // pred_region
    _
  $region9: #{channel_att.1} parent=0 // pred_fallthru
    _
  // Predicated region
  $region10: #{channel_att.1} parent=0 // pred_check
    _
  $region11: #{channel_att.1} parent=0 // pred_check_branch
    %13 = sbr.rel (0) target = $region13
  $region12: #{channel_att.1} parent=0 // pred_region
    _
  $region13: #{channel_att.1} parent=0 // pred_fallthru
    _
  %v14 = vld [vmem:[%s0] sm:$0xff]
  %v15 = vld [vmem:[%s0 + $0x8] sm:$0xff]
  %18 = vst [vmem:[#allocation1] ss:$2 sm:$0xff] %v14
  %v19 = vld.sshfl [vmem:[#allocation1] sm:$0xff pattern:$0x75316420]
  %v20 = vld.sshfl [vmem:[#allocation1 + $0x8] sm:$0xff pattern:$0x75316420]
  %s21 = scalar_lea.vmem [#allocation1], 16
  %22 = vst [vmem:[%s21] ss:$2 sm:$0xff] %v15
  %v23 = vld.sshfl [vmem:[#allocation1 + $0x10] sm:$0xff pattern:$0x75316420]
  %v24 = vld.sshfl [vmem:[#allocation1 + $0x18] sm:$0xff pattern:$0x75316420]
  %vm29 = vcmask 1043456
  %v30 = vsel %vm29, %v19, 0.0
  %v31 = vsel %vm29, %v20, 0.0
  %v32 = vadd.f32 %v30, %v31
  %33 = vadd.xlane.f32.xlu0 %v32
  %v34 = vpop.xlane.xlu0 %33
  %v35 = vsel %vm29, %v23, 0.0
  %v36 = vsel %vm29, %v24, 0.0
  %v37 = vadd.f32 %v35, %v36
  %38 = vadd.xlane.f32.xlu0 %v37
  %v39 = vpop.xlane.xlu0 %38
  %v40 = vsel %vm29, %v34, 0.0
  %v41 = vsel %vm29, %v39, 0.0
  %v42 = vadd.f32 %v40, %v41
  %v43 = vmul.f32 %v42, 0.001953125
  %v46 = vunpack.c.l.s4 839922192
  %v47 = vunpack.c.0.s8 %v46
  %v48 = vperm.slane %v43, %v47
  %v50 = vsub.f32 %v14, %v48
  %v51 = vsub.f32 %v15, %v48
  %v52 = vmul.f32 %v50, %v50
  %v53 = vmul.f32 %v51, %v51
  %56 = vst [vmem:[#allocation1] ss:$2 sm:$0xff] %v52
  %v57 = vld.sshfl [vmem:[#allocation1] sm:$0xff pattern:$0x75316420]
  %v58 = vld.sshfl [vmem:[#allocation1 + $0x8] sm:$0xff pattern:$0x75316420]
  %s59 = scalar_lea.vmem [#allocation1], 16
  %60 = vst [vmem:[%s59] ss:$2 sm:$0xff] %v53
  %v61 = vld.sshfl [vmem:[#allocation1 + $0x10] sm:$0xff pattern:$0x75316420]
  %v62 = vld.sshfl [vmem:[#allocation1 + $0x18] sm:$0xff pattern:$0x75316420]
  %v67 = vsel %vm29, %v57, 0.0
  %v68 = vsel %vm29, %v58, 0.0
  %v69 = vadd.f32 %v67, %v68
  %70 = vadd.xlane.f32.xlu0 %v69
  %v71 = vpop.xlane.xlu0 %70
  %v72 = vsel %vm29, %v61, 0.0
  %v73 = vsel %vm29, %v62, 0.0
  %v74 = vadd.f32 %v72, %v73
  %75 = vadd.xlane.f32.xlu0 %v74
  %v76 = vpop.xlane.xlu0 %75
  %v77 = vsel %vm29, %v71, 0.0
  %v78 = vsel %vm29, %v76, 0.0
  %v79 = vadd.f32 %v77, %v78
  %v80 = vmul.f32 %v79, 0.001953125
  %v81 = vadd.f32 %v80, 1e-05
  %v82 = vrsqrt.pop %v81
  %v83 = vmul.f32 %v82, %v81
  %v84 = vmul.f32 %v83, %v82
  %v85 = vmul.f32 0.5, %v84
  %v86 = vsub.f32 1.5, %v85
  %v87 = vmul.f32 %v82, %v86
  %vm88 = vweird.f32 %v81
  %vm89 = vweird.f32 %v82
  %vm90 = vmor %vm88, %vm89
  %v91 = vsel %vm90, %v82, %v87
  %v92 = vld [vmem:[%s1] sm:$0xf]
  %v93 = vmul.f32 %v91, %v92
  %95 = vset.pattern.permute.xlu0 0
  %96 = vperm.xlu0 %95, %v93
  %v97 = vpop.permute.xlu0 %96
  %v99 = vunpack.c.l.s4 839922192
  %v100 = vunpack.c.0.s8 %v99
  %v101 = vperm.slane %v97, %v100
  %v103 = vmul.f32 %v50, %v101
  %v104 = vmul.f32 %v51, %v101
  %v105 = vld [vmem:[%s2] sm:$0xf]
  %107 = vset.pattern.permute.xlu0 0
  %108 = vperm.xlu0 %107, %v105
  %v109 = vpop.permute.xlu0 %108
  %v111 = vunpack.c.l.s4 839922192
  %v112 = vunpack.c.0.s8 %v111
  %v113 = vperm.slane %v109, %v112
  %v115 = vadd.f32 %v103, %v113
  %v116 = vadd.f32 %v104, %v113
  %v117 = vsub.f32 0.0, %v115
  %v118 = vsub.f32 0.0, %v116
  %v119 = vmul.f32 %v117, 1.442695
  %v120 = vpow.pop %v119
  %v121 = vmul.f32 %v118, 1.442695
  %v122 = vpow.pop %v121
  %v123 = vadd.f32 %v120, 1.0
  %v124 = vadd.f32 %v122, 1.0
  %v125 = vrcp.pop %v123
  %v126 = vmul.f32 %v123, %v125
  %v127 = vsub.f32 1.0, %v126
  %v128 = vmul.f32 %v125, %v127
  %v129 = vadd.f32 %v125, %v128
  %vm130 = vweird.f32 %v123
  %vm131 = vweird.f32 %v125
  %vm132 = vmor %vm130, %vm131
  %v133 = vsel %vm132, %v125, %v129
  %v134 = vand.u32 2147483647, %v123
  %vm135 = vcmp.eq.f32.partialorder %v134, 8.507059e+37
  %v136 = vand.u32 %v123, 2147483648
  %v137 = vor.u32 1.1754944e-38, %v136
  %v138 = vsel %vm135, %v137, %v133
  %v139 = vmul.f32 1.0, %v138
  %v140 = vrcp.pop %v124
  %v141 = vmul.f32 %v124, %v140
  %v142 = vsub.f32 1.0, %v141
  %v143 = vmul.f32 %v140, %v142
  %v144 = vadd.f32 %v140, %v143
  %vm145 = vweird.f32 %v124
  %vm146 = vweird.f32 %v140
  %vm147 = vmor %vm145, %vm146
  %v148 = vsel %vm147, %v140, %v144
  %v149 = vand.u32 2147483647, %v124
  %vm150 = vcmp.eq.f32.partialorder %v149, 8.507059e+37
  %v151 = vand.u32 %v124, 2147483648
  %v152 = vor.u32 1.1754944e-38, %v151
  %v153 = vsel %vm150, %v152, %v148
  %v154 = vmul.f32 1.0, %v153
  %v155 = vmul.f32 %v139, %v14
  %v156 = vmul.f32 %v154, %v15
  %157 = vst [vmem:[%s3] sm:$0xff] %v155
  %158 = vst [vmem:[%s3 + $0x8] sm:$0xff] %v156
  // Predicated region
  $region14: #{channel_att.1} parent=0 // pred_check
    _
  $region15: #{channel_att.1} parent=0 // pred_check_branch
    %160 = sbr.rel (0) target = $region17
  $region16: #{channel_att.1} parent=0 // pred_region
    _
  $region17: #{channel_att.1} parent=0 // pred_fallthru
    _
  // Predicated region
  $region18: #{channel_att.1} parent=0 // pred_check
    _
  $region19: #{channel_att.1} parent=0 // pred_check_branch
    %162 = sbr.rel (0) target = $region21
  $region20: #{channel_att.1} parent=0 // pred_region
    _
  $region21: #{channel_att.1} parent=0 // pred_fallthru
    _

</llo_original>
